<compile_context>
chip_gen: v5e
topology: v5e:2x2
jax: 0.10.0
libtpu: 0.0.40
codegen_flags: <defaults>
</compile_context>

<pallas_src>
import functools

import jax
import jax.numpy as jnp
import numpy as np
from jax.experimental import pallas as pl
from jax.experimental.pallas import tpu as pltpu

EPS = 1e-6                      # PAM_Module eps
_VPU_M_CONTRACTION_MAX = 16     # use VPU rank-1 sums for the M-contraction when M <= this


def pam_cam_kernel(gamma_ref,          # SMEM (2,)         : [gamma_pam, gamma_cam]
                   x_ref,              # VMEM (1, C, tn)   : current spatial tile (f32)
                   wkv_ref,            # VMEM (C+M, C)     : [wv; wk] fused (bf16)
                   bkv_ref,            # VMEM (C+M, 1)     : [bv; bk] fused (f32)
                   wq_ref,             # VMEM (M, C)       : bf16
                   bq_ref,             # VMEM (M, 1)       : f32
                   out_ref,            # VMEM (1, C, tn)
                   kv_acc,             # VMEM (C, M)  f32  : KV^T accumulator
                   ksum_acc,           # VMEM (M, 1)  f32  : sum_n K accumulator
                   energy_acc,         # VMEM (C, C)  f32  : CAM energy accumulator
                   attnq_scr,          # VMEM (C+M, C) bf16: fused [attn; wq] operand
                   *, n_valid, has_pad):
    ph = pl.program_id(1)   # 0 = accumulate over N tiles, 1 = apply + write
    nt = pl.program_id(2)   # N-tile index
    n_tiles = pl.num_programs(2)
    C = out_ref.shape[1]
    M = wq_ref.shape[0]
    tn = x_ref.shape[2]

    @pl.when(jnp.logical_and(ph == 0, nt == 0))
    def _init():
        kv_acc[...] = jnp.zeros_like(kv_acc)
        ksum_acc[...] = jnp.zeros_like(ksum_acc)
        energy_acc[...] = jnp.zeros_like(energy_acc)
        # The wq rows of the fused phase-1 operand never change within a batch element.
        attnq_scr[C:, :] = wq_ref[...]

    # ---------------- phase 0: accumulate global (over N) statistics ----------------
    @pl.when(ph == 0)
    def _accumulate():
        x = x_ref[0]                               # (C, tn) f32 (kept exact for residual)
        xb = x.astype(jnp.bfloat16)                # bf16 MXU operand

        # Fused V/K projection: one bf16 MXU pass with f32 accumulation, fused bias.
        vk = jnp.dot(wkv_ref[...], xb,
                     preferred_element_type=jnp.float32) + bkv_ref[...]       # (C+M, tn)
        v = vk[:C]                                                            # (C, tn)
        k = jnp.logaddexp(vk[C:], 0.0)                                        # (M, tn) softplus
        if has_pad:
            # Zero K on zero-padded tail columns so KV / sum_K accumulate exactly
            # (x columns are already zero-padded, so the energy matmul is exact).
            col = nt * tn + jax.lax.broadcasted_iota(jnp.int32, (1, tn), 1)
            k = jnp.where(col < n_valid, k, 0.0)

        # KV^T[c, m] += sum_n V[c, n] * K[m, n]   (bf16 operands, f32 accumulate)
        kv_acc[...] += jax.lax.dot_general(
            v.astype(jnp.bfloat16), k.astype(jnp.bfloat16),
            (((1,), (1,)), ((), ())), preferred_element_type=jnp.float32)
        ksum_acc[...] += jnp.sum(k, axis=1, keepdims=True)                    # (M, 1)

        # CAM energy[c, d] += sum_n x[c, n] * x[d, n].  Kept with f32 operands:
        # the softmax logits scale ~ N*|x|^2, so bf16 operand rounding (rel ~4e-3)
        # could shift logits by O(1) and visibly perturb the attention weights.
        energy_acc[...] += jax.lax.dot_general(
            x, x, (((1,), (1,)), ((), ())), preferred_element_type=jnp.float32)

        # CAM softmax folded into the last phase-0 step: it overlaps the DMA prefetch
        # of the first phase-1 x tile instead of serializing in front of phase 1.
        @pl.when(nt == n_tiles - 1)
        def _softmax():
            energy = energy_acc[...]                                          # (C, C)
            # softmax(rowmax(E) - E) stabilized == exp(rowmin(E) - E) / rowsum(...)
            e = jnp.exp(jnp.min(energy, axis=-1, keepdims=True) - energy)
            attn = e * pl.reciprocal(jnp.sum(e, axis=-1, keepdims=True), approx=True)
            attnq_scr[:C, :] = attn.astype(attnq_scr.dtype)

    # ---------------- phase 1: apply attention and write the output tile ------------
    @pl.when(ph == 1)
    def _apply():
        x = x_ref[0]                                                          # (C, tn) f32
        xb = x.astype(jnp.bfloat16)
        g_pam = gamma_ref[0]
        g_cam = gamma_ref[1]

        # Single fused bf16 MXU pass per tile: rows [:C] = attn @ x (CAM output),
        # rows [C:] = wq @ x (pre-activation Q) -- removes one padded MXU pass/tile.
        ac = jnp.dot(attnq_scr[...], xb, preferred_element_type=jnp.float32)  # (C+M, tn)
        cam = ac[:C]                                                          # (C, tn)
        q = jnp.logaddexp(ac[C:] + bq_ref[...], 0.0)                          # (M, tn)

        # denom[n] = sum_m Q[m, n] * (sum_n' K[m, n'] + eps)  -- VPU (M is tiny)
        ks = ksum_acc[...] + EPS                                              # (M, 1)
        denom = jnp.sum(q * ks, axis=0, keepdims=True)                        # (1, tn)
        norm = pl.reciprocal(denom, approx=True)                              # (1, tn)

        kv = kv_acc[...]                                                      # (C, M)
        if M <= _VPU_M_CONTRACTION_MAX:
            # M-contraction as a sum of rank-1 outer products on the VPU (an MXU pass
            # would be >98% zero padding for M << 128); tree-summed to expose ILP.
            terms = [kv[:, m:m + 1] * q[m:m + 1, :] for m in range(M)]
            while len(terms) > 1:
                nxt = [terms[i] + terms[i + 1] for i in range(0, len(terms) - 1, 2)]
                if len(terms) % 2:
                    nxt.append(terms[-1])
                terms = nxt
            pam = terms[0]                                                    # (C, tn)
        else:
            pam = jnp.dot(kv.astype(jnp.bfloat16), q.astype(jnp.bfloat16),
                          preferred_element_type=jnp.float32)                 # (C, tn)

        # PAM(x) + CAM(x) = (x + g_pam * pam*norm) + (g_cam * cam + x)
        out = 2.0 * x + g_pam * (pam * norm) + g_cam * cam
        out_ref[0] = out.astype(out_ref.dtype)


def _tpu_vmem_limit_bytes():
    """Generation-aware scoped-VMEM limit: ~64 MiB on 128-MiB parts (v5e/v6e),
    ~48 MiB on v7x (64 MiB physical).  Conservative fallback if the query fails."""
    cap = None
    try:
        cap = getattr(pltpu.get_tpu_info(), "vmem_capacity_bytes", None)
    except Exception:
        cap = None
    if not cap:
        cap = 64 << 20          # v7x per-core VMEM (worst case)
    return min(int(cap) * 3 // 4, 64 << 20)


def _pick_tile_n(C, M, N, out_bytes, vmem_limit):
    """Largest N tile (N itself, or a multiple of 128) whose live f32 working set
    fits the VMEM budget after subtracting the resident weights/accumulators."""
    resident = (4 * C * C                          # energy accumulator (f32)
                + 2 * (C + M) * C                  # fused [attn; wq] operand (bf16)
                + 2 * 2 * (C + M) * C              # wkv weights (bf16, double-buffered)
                + 2 * 2 * M * C                    # wq weights  (bf16, double-buffered)
                + 4 * (C * M + M + 2 * (C + M)))   # kv/ksum accumulators + biases
    budget = max(vmem_limit - resident - (4 << 20), 2 << 20)
    # live bytes per output column: x + out double-buffered, projection / fused-attn
    # f32 intermediates, pam/out temporaries, bf16 copy of x.
    per_col = 4 * (4 * C) + out_bytes * 2 * C + 4 * (4 * C + 4 * M) + 2 * C
    cap = budget // per_col
    if N <= cap:
        return int(N)                              # whole-slab: x read from HBM once
    return int(max(128, (cap // 128) * 128))


def pam_cam_layer(x_nchw, params, *, tile_n=None):
    B, C, H, W = x_nchw.shape
    N = H * W
    M = params["wq"].shape[0]
    out_dtype = x_nchw.dtype
    vmem_limit = _tpu_vmem_limit_bytes()

    if tile_n is None:
        tile_n = _pick_tile_n(C, M, N, jnp.dtype(out_dtype).itemsize, vmem_limit)
    if tile_n >= N:
        tile_n, n_pad = N, N                       # whole-slab path (full-extent block)
    else:
        assert tile_n % 128 == 0, "streamed N tiles must be lane-dense multiples of 128"
        n_pad = -(-N // tile_n) * tile_n           # pad N up so every tile is full-width
    n_tiles = n_pad // tile_n
    has_pad = n_pad != N

    x_flat = x_nchw.reshape(B, C, N)
    if has_pad:
        x_flat = jnp.pad(x_flat, ((0, 0), (0, 0), (0, n_pad - N)))

    gammas = jnp.array([params["gamma_pam"], params["gamma_cam"]], dtype=jnp.float32)
    # Fuse the V and K 1x1-conv weights/biases; pre-cast weights to bf16 so every MXU
    # pass runs native bf16 (f32 accumulation via preferred_element_type in-kernel).
    wkv = jnp.concatenate([params["wv"], params["wk"]], axis=0).astype(jnp.bfloat16)
    bkv = jnp.concatenate([params["bv"], params["bk"]], axis=0).astype(jnp.float32)
    wq = params["wq"].astype(jnp.bfloat16)
    bq = params["bq"].astype(jnp.float32)

    cost = pl.CostEstimate(
        flops=int(2 * B * n_pad * (2 * (C + M) * C + C * C + 2 * C * M)),
        transcendentals=int(B * (C * C + 2 * M * n_pad + n_pad)),
        bytes_accessed=int(4 * B * C * (2 * n_pad + N) + 8 * (C + M) * C),
    )

    kernel = functools.partial(pam_cam_kernel, n_valid=N, has_pad=has_pad)

    out_flat = pl.pallas_call(
        kernel,
        out_shape=jax.ShapeDtypeStruct((B, C, n_pad), out_dtype),
        grid=(B, 2, n_tiles),
        in_specs=[
            pl.BlockSpec(memory_space=pltpu.MemorySpace.SMEM),               # gammas
            pl.BlockSpec((1, C, tile_n), lambda b, ph, nt: (b, 0, nt)),      # x tile
            pl.BlockSpec((C + M, C), lambda b, ph, nt: (0, 0)),              # wkv (resident)
            pl.BlockSpec((C + M, 1), lambda b, ph, nt: (0, 0)),              # bkv
            pl.BlockSpec((M, C), lambda b, ph, nt: (0, 0)),                  # wq
            pl.BlockSpec((M, 1), lambda b, ph, nt: (0, 0)),                  # bq
        ],
        # NOTE (intentional, relies on flush-on-block-index-change semantics): during
        # phase 0 the output block index is pinned to tile 0, so the never-written
        # phase-0 buffer is not flushed; each output block is written exactly once in
        # phase 1 with lane-dense tiles.  Revisit if Pallas writeback semantics change.
        out_specs=pl.BlockSpec((1, C, tile_n), lambda b, ph, nt: (b, 0, nt * ph)),
        scratch_shapes=[
            pltpu.VMEM((C, M), jnp.float32),        # KV^T accumulator
            pltpu.VMEM((M, 1), jnp.float32),        # sum_K accumulator
            pltpu.VMEM((C, C), jnp.float32),        # CAM energy accumulator (f32)
            pltpu.VMEM((C + M, C), jnp.bfloat16),   # fused [attn; wq] phase-1 operand
        ],
        compiler_params=pltpu.CompilerParams(
            # Batch axis "parallel": feeds both v7x TensorCores whenever B >= 2.
            dimension_semantics=("parallel", "arbitrary", "arbitrary"),
            vmem_limit_bytes=vmem_limit,
        ),
        cost_estimate=cost,
    )(gammas, x_flat, wkv, bkv, wq, bq)

    if has_pad:
        out_flat = out_flat[:, :, :N]
    return out_flat.reshape(B, C, H, W)


def reference(x_nchw, params):
    """Plain-JAX (f32) mirror of the PyTorch forward (for correctness checking)."""
    B, C, H, W = x_nchw.shape
    N = H * W
    xf = x_nchw.reshape(B, C, N).astype(jnp.float32)
    sp = lambda v: jnp.logaddexp(v, 0.0)

    Q = sp(jnp.einsum('mc,bcn->bmn', params["wq"], xf) + params["bq"][None])
    K = sp(jnp.einsum('mc,bcn->bmn', params["wk"], xf) + params["bk"][None])
    V = jnp.einsum('dc,bcn->bdn', params["wv"], xf) + params["bv"][None]
    Qp = jnp.transpose(Q, (0, 2, 1))                                   # (B, N, M)
    KV = jnp.einsum('bmn,bcn->bmc', K, V)
    norm = 1.0 / jnp.einsum('bnm,bm->bn', Qp, jnp.sum(K, axis=-1) + EPS)
    wv = jnp.einsum('bnm,bmc,bn->bcn', Qp, KV, norm)
    pam = xf + params["gamma_pam"] * wv

    energy = jnp.einsum('bcn,bdn->bcd', xf, xf)
    energy_new = jnp.max(energy, axis=-1, keepdims=True) - energy
    attn = jax.nn.softmax(energy_new, axis=-1)
    cam = params["gamma_cam"] * jnp.einsum('bcd,bdn->bcn', attn, xf) + xf

    return (pam + cam).reshape(B, C, H, W)


if __name__ == "__main__":
    # Small shapes consistent with the module: in_ch >= 8 (scale=8), square spatial.
    B, C, H, W = 2, 16, 16, 16
    M = C // 8  # query/key channels

    key = jax.random.PRNGKey(0)
    k_x, k_wq, k_bq, k_wk, k_bk, k_wv, k_bv, k_x2 = jax.random.split(key, 8)

    x = jax.random.normal(k_x, (B, C, H, W), dtype=jnp.float32)

    params = {
        # Conv2d 1x1 weights (out, in, 1, 1) squeezed to (out, in); deterministic init.
        "wq": 0.1 * jax.random.normal(k_wq, (M, C), dtype=jnp.float32),
        "bq": 0.1 * jax.random.normal(k_bq, (M, 1), dtype=jnp.float32),
        "wk": 0.1 * jax.random.normal(k_wk, (M, C), dtype=jnp.float32),
        "bk": 0.1 * jax.random.normal(k_bk, (M, 1), dtype=jnp.float32),
        "wv": 0.1 * jax.random.normal(k_wv, (C, C), dtype=jnp.float32),
        "bv": 0.1 * jax.random.normal(k_bv, (C, 1), dtype=jnp.float32),
        # torch __init__ uses gamma = 0; nonzero here so the attention paths contribute.
        "gamma_pam": 0.5,
        "gamma_cam": 0.25,
    }

    ref = reference(x, params)

    # Tolerance budget: bf16 MXU operands on the V/K/Q projections and the CAM apply
    # (rel ~2^-8) plus approx EUP reciprocals (rel ~2^-12) vs. an all-f32 reference.
    # The CAM energy/softmax path is kept f32 in-kernel, so no logit-scale error.
    TOL = 1e-2

    # Whole-slab path (tile picker chooses n_tiles == 1 at this size).
    out_slab = jax.block_until_ready(pam_cam_layer(x, params))
    np.testing.assert_allclose(np.asarray(out_slab), np.asarray(ref), rtol=TOL, atol=TOL)

    # Streaming path: force two N tiles to exercise the two-phase accumulation.
    out_stream = jax.block_until_ready(pam_cam_layer(x, params, tile_n=128))
    np.testing.assert_allclose(np.asarray(out_stream), np.asarray(ref), rtol=TOL, atol=TOL)

    # Padded streaming path: N = 144 has no multiple-of-128 divisor; exercises the
    # zero-pad + in-kernel K mask that replaced the old whole-slab fallback.
    x2 = jax.random.normal(k_x2, (B, C, 12, 12), dtype=jnp.float32)
    ref2 = reference(x2, params)
    out_pad = jax.block_until_ready(pam_cam_layer(x2, params, tile_n=128))
    np.testing.assert_allclose(np.asarray(out_pad), np.asarray(ref2), rtol=TOL, atol=TOL)

    print("KERNEL_OK")
</pallas_src>

<mosaic_0001>
module attributes {stable_mosaic.version = 11 : i64} {
  func.func @pam_cam_kernel(%arg0: i32, %arg1: i32, %arg2: i32, %arg3: memref<2xf32, #tpu.memory_space<smem>>, %arg4: memref<1x16x256xf32, #tpu.memory_space<vmem>>, %arg5: memref<18x16xbf16, #tpu.memory_space<vmem>>, %arg6: memref<18x1xf32, #tpu.memory_space<vmem>>, %arg7: memref<2x16xbf16, #tpu.memory_space<vmem>>, %arg8: memref<2x1xf32, #tpu.memory_space<vmem>>, %arg9: memref<1x16x256xf32, #tpu.memory_space<vmem>>, %arg10: memref<16x2xf32, #tpu.memory_space<vmem>>, %arg11: memref<2x1xf32, #tpu.memory_space<vmem>>, %arg12: memref<16x16xf32, #tpu.memory_space<vmem>>, %arg13: memref<18x16xbf16, #tpu.memory_space<vmem>>) attributes {dimension_semantics = [#tpu.dimension_semantics<parallel>, #tpu.dimension_semantics<arbitrary>, #tpu.dimension_semantics<arbitrary>], iteration_bounds = array<i64: 2, 2, 1>, scalar_prefetch = 0 : i64, scratch_operands = 4 : i64, tpu.core_type = #tpu.core_type<tc>, window_params = [{transform_indices = @transform_0, window_bounds = array<i64: 2>}, {transform_indices = @transform_1, window_bounds = array<i64: 1, 16, 256>}, {pipeline_mode = #tpu.pipeline_mode<synchronous>, transform_indices = @transform_2, window_bounds = array<i64: 18, 16>}, {pipeline_mode = #tpu.pipeline_mode<synchronous>, transform_indices = @transform_3, window_bounds = array<i64: 18, 1>}, {pipeline_mode = #tpu.pipeline_mode<synchronous>, transform_indices = @transform_4, window_bounds = array<i64: 2, 16>}, {pipeline_mode = #tpu.pipeline_mode<synchronous>, transform_indices = @transform_5, window_bounds = array<i64: 2, 1>}, {transform_indices = @transform_6, window_bounds = array<i64: 1, 16, 256>}]} {
    %c0_i32 = arith.constant 0 : i32
    %0 = arith.cmpi eq, %arg1, %c0_i32 : i32
    %c0_i32_0 = arith.constant 0 : i32
    %1 = arith.cmpi eq, %arg2, %c0_i32_0 : i32
    %2 = arith.andi %0, %1 : i1
    %3 = arith.extui %2 : i1 to i32
    %c0_i32_1 = arith.constant 0 : i32
    %4 = arith.cmpi ne, %3, %c0_i32_1 : i32
    scf.if %4 {
      %cst = arith.constant 0.000000e+00 : f32
      %11 = vector.broadcast %cst : f32 to vector<16x2xf32>
      %c0 = arith.constant 0 : index
      %c0_5 = arith.constant 0 : index
      %12 = vector.load %arg10[%c0, %c0_5] : memref<16x2xf32, #tpu.memory_space<vmem>>, vector<16x2xf32>
      tpu.vector_store %arg10[%c0, %c0_5], %11 {strides = array<i32>} : memref<16x2xf32, #tpu.memory_space<vmem>>, vector<16x2xf32>,
      %cst_6 = arith.constant 0.000000e+00 : f32
      %13 = vector.broadcast %cst_6 : f32 to vector<2x1xf32>
      %c0_7 = arith.constant 0 : index
      %c0_8 = arith.constant 0 : index
      %14 = vector.load %arg11[%c0_7, %c0_8] : memref<2x1xf32, #tpu.memory_space<vmem>>, vector<2x1xf32>
      tpu.vector_store %arg11[%c0_7, %c0_8], %13 {strides = array<i32>} : memref<2x1xf32, #tpu.memory_space<vmem>>, vector<2x1xf32>,
      %cst_9 = arith.constant 0.000000e+00 : f32
      %15 = vector.broadcast %cst_9 : f32 to vector<16x16xf32>
      %c0_10 = arith.constant 0 : index
      %c0_11 = arith.constant 0 : index
      %16 = vector.load %arg12[%c0_10, %c0_11] : memref<16x16xf32, #tpu.memory_space<vmem>>, vector<16x16xf32>
      tpu.vector_store %arg12[%c0_10, %c0_11], %15 {strides = array<i32>} : memref<16x16xf32, #tpu.memory_space<vmem>>, vector<16x16xf32>,
      %c0_12 = arith.constant 0 : index
      %c0_13 = arith.constant 0 : index
      %17 = vector.load %arg7[%c0_12, %c0_13] : memref<2x16xbf16, #tpu.memory_space<vmem>>, vector<2x16xbf16>
      %c16 = arith.constant 16 : index
      %c0_14 = arith.constant 0 : index
      %18 = vector.load %arg13[%c16, %c0_14] : memref<18x16xbf16, #tpu.memory_space<vmem>>, vector<2x16xbf16>
      tpu.vector_store %arg13[%c16, %c0_14], %17 {strides = array<i32>} : memref<18x16xbf16, #tpu.memory_space<vmem>>, vector<2x16xbf16>,
    } else {
    }
    %c0_i32_2 = arith.constant 0 : i32
    %5 = arith.cmpi eq, %arg1, %c0_i32_2 : i32
    %6 = arith.extui %5 : i1 to i32
    %c0_i32_3 = arith.constant 0 : i32
    %7 = arith.cmpi ne, %6, %c0_i32_3 : i32
    scf.if %7 {
      %c0 = arith.constant 0 : index
      %c0_5 = arith.constant 0 : index
      %c0_6 = arith.constant 0 : index
      %11 = vector.load %arg4[%c0, %c0_5, %c0_6] : memref<1x16x256xf32, #tpu.memory_space<vmem>>, vector<1x16x256xf32>
      %12 = vector.shape_cast %11 : vector<1x16x256xf32> to vector<16x256xf32>
      %13 = arith.truncf %12 : vector<16x256xf32> to vector<16x256xbf16>
      %c0_7 = arith.constant 0 : index
      %c0_8 = arith.constant 0 : index
      %14 = vector.load %arg5[%c0_7, %c0_8] : memref<18x16xbf16, #tpu.memory_space<vmem>>, vector<18x16xbf16>
      %cst = arith.constant dense<0.000000e+00> : vector<18x256xf32>
      %15 = tpu.matmul %14, %13, %cst {dimension_numbers = #tpu.dot_dimension_numbers<[1], [0], [0], [1], [0, 0, 1, 1], [], []>} : vector<18x16xbf16>, vector<16x256xbf16>, vector<18x256xf32> -> vector<18x256xf32>
      %c0_9 = arith.constant 0 : index
      %c0_10 = arith.constant 0 : index
      %16 = vector.load %arg6[%c0_9, %c0_10] : memref<18x1xf32, #tpu.memory_space<vmem>>, vector<18x1xf32>
      %17 = vector.broadcast %16 : vector<18x1xf32> to vector<18x256xf32>
      %18 = arith.addf %15, %17 : vector<18x256xf32>
      %19 = vector.extract_strided_slice %18 {offsets = [0, 0], sizes = [16, 256], strides = [1, 1]} : vector<18x256xf32> to vector<16x256xf32>
      %20 = vector.extract_strided_slice %18 {offsets = [16, 0], sizes = [2, 256], strides = [1, 1]} : vector<18x256xf32> to vector<2x256xf32>
      %cst_11 = arith.constant 0.000000e+00 : f32
      %21 = vector.broadcast %cst_11 : f32 to vector<2x256xf32>
      %22 = arith.maximumf %20, %21 : vector<2x256xf32>
      %23 = vector.broadcast %cst_11 : f32 to vector<2x256xf32>
      %24 = arith.subf %20, %23 : vector<2x256xf32>
      %25 = arith.cmpf one, %24, %24 : vector<2x256xf32>
      %26 = vector.broadcast %cst_11 : f32 to vector<2x256xf32>
      %27 = arith.addf %20, %26 : vector<2x256xf32>
      %28 = math.absf %24 : vector<2x256xf32>
      %cst_12 = arith.constant 0.000000e+00 : f32
      %29 = vector.broadcast %cst_12 : f32 to vector<2x256xf32>
      %30 = arith.subf %29, %28 : vector<2x256xf32>
      %31 = math.exp %30 : vector<2x256xf32>
      %32 = math.log1p %31 : vector<2x256xf32>
      %33 = arith.addf %22, %32 : vector<2x256xf32>
      %34 = arith.select %25, %27, %33 : vector<2x256xi1>, vector<2x256xf32>
      %c0_13 = arith.constant 0 : index
      %c0_14 = arith.constant 0 : index
      %35 = vector.load %arg10[%c0_13, %c0_14] : memref<16x2xf32, #tpu.memory_space<vmem>>, vector<16x2xf32>
      %36 = arith.truncf %19 : vector<16x256xf32> to vector<16x256xbf16>
      %37 = arith.truncf %34 : vector<2x256xf32> to vector<2x256xbf16>
      %cst_15 = arith.constant dense<0.000000e+00> : vector<16x2xf32>
      %38 = tpu.matmul %36, %37, %cst_15 {dimension_numbers = #tpu.dot_dimension_numbers<[1], [1], [0], [0], [0, 0, 1, 0], [], []>} : vector<16x256xbf16>, vector<2x256xbf16>, vector<16x2xf32> -> vector<16x2xf32>
      %39 = arith.addf %35, %38 : vector<16x2xf32>
      %c0_16 = arith.constant 0 : index
      %c0_17 = arith.constant 0 : index
      %40 = vector.load %arg10[%c0_16, %c0_17] : memref<16x2xf32, #tpu.memory_space<vmem>>, vector<16x2xf32>
      tpu.vector_store %arg10[%c0_16, %c0_17], %39 {strides = array<i32>} : memref<16x2xf32, #tpu.memory_space<vmem>>, vector<16x2xf32>,
      %c0_18 = arith.constant 0 : index
      %c0_19 = arith.constant 0 : index
      %41 = vector.load %arg11[%c0_18, %c0_19] : memref<2x1xf32, #tpu.memory_space<vmem>>, vector<2x1xf32>
      %cst_20 = arith.constant dense<0.000000e+00> : vector<2xf32>
      %42 = vector.multi_reduction <add>, %34, %cst_20 [1] : vector<2x256xf32> to vector<2xf32>
      %43 = vector.shape_cast %42 : vector<2xf32> to vector<2x1xf32>
      %44 = arith.addf %41, %43 : vector<2x1xf32>
      %c0_21 = arith.constant 0 : index
      %c0_22 = arith.constant 0 : index
      %45 = vector.load %arg11[%c0_21, %c0_22] : memref<2x1xf32, #tpu.memory_space<vmem>>, vector<2x1xf32>
      tpu.vector_store %arg11[%c0_21, %c0_22], %44 {strides = array<i32>} : memref<2x1xf32, #tpu.memory_space<vmem>>, vector<2x1xf32>,
      %c0_23 = arith.constant 0 : index
      %c0_24 = arith.constant 0 : index
      %46 = vector.load %arg12[%c0_23, %c0_24] : memref<16x16xf32, #tpu.memory_space<vmem>>, vector<16x16xf32>
      %cst_25 = arith.constant dense<0.000000e+00> : vector<16x16xf32>
      %47 = tpu.matmul %12, %12, %cst_25 {dimension_numbers = #tpu.dot_dimension_numbers<[1], [1], [0], [0], [0, 0, 1, 0], [], []>} : vector<16x256xf32>, vector<16x256xf32>, vector<16x16xf32> -> vector<16x16xf32>
      %48 = arith.addf %46, %47 : vector<16x16xf32>
      %c0_26 = arith.constant 0 : index
      %c0_27 = arith.constant 0 : index
      %49 = vector.load %arg12[%c0_26, %c0_27] : memref<16x16xf32, #tpu.memory_space<vmem>>, vector<16x16xf32>
      tpu.vector_store %arg12[%c0_26, %c0_27], %48 {strides = array<i32>} : memref<16x16xf32, #tpu.memory_space<vmem>>, vector<16x16xf32>,
      %c0_i32_28 = arith.constant 0 : i32
      %50 = arith.cmpi eq, %arg2, %c0_i32_28 : i32
      %51 = arith.extui %50 : i1 to i32
      %c0_i32_29 = arith.constant 0 : i32
      %52 = arith.cmpi ne, %51, %c0_i32_29 : i32
      scf.if %52 {
        %c0_30 = arith.constant 0 : index
        %c0_31 = arith.constant 0 : index
        %53 = vector.load %arg12[%c0_30, %c0_31] : memref<16x16xf32, #tpu.memory_space<vmem>>, vector<16x16xf32>
        %cst_32 = arith.constant dense<0x7F800000> : vector<16xf32>
        %54 = vector.multi_reduction <minimumf>, %53, %cst_32 [1] : vector<16x16xf32> to vector<16xf32>
        %55 = vector.shape_cast %54 : vector<16xf32> to vector<16x1xf32>
        %56 = vector.broadcast %55 : vector<16x1xf32> to vector<16x16xf32>
        %57 = arith.subf %56, %53 : vector<16x16xf32>
        %58 = math.exp %57 : vector<16x16xf32>
        %cst_33 = arith.constant dense<0.000000e+00> : vector<16xf32>
        %59 = vector.multi_reduction <add>, %58, %cst_33 [1] : vector<16x16xf32> to vector<16xf32>
        %60 = vector.shape_cast %59 : vector<16xf32> to vector<16x1xf32>
        %61 = tpu.reciprocal %60 {approx = true} : vector<16x1xf32> -> vector<16x1xf32>
        %62 = vector.broadcast %61 : vector<16x1xf32> to vector<16x16xf32>
        %63 = arith.mulf %58, %62 : vector<16x16xf32>
        %64 = arith.truncf %63 : vector<16x16xf32> to vector<16x16xbf16>
        %c0_34 = arith.constant 0 : index
        %c0_35 = arith.constant 0 : index
        %65 = vector.load %arg13[%c0_34, %c0_35] : memref<18x16xbf16, #tpu.memory_space<vmem>>, vector<16x16xbf16>
        tpu.vector_store %arg13[%c0_34, %c0_35], %64 {strides = array<i32>} : memref<18x16xbf16, #tpu.memory_space<vmem>>, vector<16x16xbf16>,
      } else {
      }
    } else {
    }
    %c1_i32 = arith.constant 1 : i32
    %8 = arith.cmpi eq, %arg1, %c1_i32 : i32
    %9 = arith.extui %8 : i1 to i32
    %c0_i32_4 = arith.constant 0 : i32
    %10 = arith.cmpi ne, %9, %c0_i32_4 : i32
    scf.if %10 {
      %c0 = arith.constant 0 : index
      %c0_5 = arith.constant 0 : index
      %c0_6 = arith.constant 0 : index
      %11 = vector.load %arg4[%c0, %c0_5, %c0_6] : memref<1x16x256xf32, #tpu.memory_space<vmem>>, vector<1x16x256xf32>
      %12 = vector.shape_cast %11 : vector<1x16x256xf32> to vector<16x256xf32>
      %13 = arith.truncf %12 : vector<16x256xf32> to vector<16x256xbf16>
      %c0_7 = arith.constant 0 : index
      %14 = memref.load %arg3[%c0_7] : memref<2xf32, #tpu.memory_space<smem>>
      %c1 = arith.constant 1 : index
      %15 = memref.load %arg3[%c1] : memref<2xf32, #tpu.memory_space<smem>>
      %c0_8 = arith.constant 0 : index
      %c0_9 = arith.constant 0 : index
      %16 = vector.load %arg13[%c0_8, %c0_9] : memref<18x16xbf16, #tpu.memory_space<vmem>>, vector<18x16xbf16>
      %cst = arith.constant dense<0.000000e+00> : vector<18x256xf32>
      %17 = tpu.matmul %16, %13, %cst {dimension_numbers = #tpu.dot_dimension_numbers<[1], [0], [0], [1], [0, 0, 1, 1], [], []>} : vector<18x16xbf16>, vector<16x256xbf16>, vector<18x256xf32> -> vector<18x256xf32>
      %18 = vector.extract_strided_slice %17 {offsets = [0, 0], sizes = [16, 256], strides = [1, 1]} : vector<18x256xf32> to vector<16x256xf32>
      %19 = vector.extract_strided_slice %17 {offsets = [16, 0], sizes = [2, 256], strides = [1, 1]} : vector<18x256xf32> to vector<2x256xf32>
      %c0_10 = arith.constant 0 : index
      %c0_11 = arith.constant 0 : index
      %20 = vector.load %arg8[%c0_10, %c0_11] : memref<2x1xf32, #tpu.memory_space<vmem>>, vector<2x1xf32>
      %21 = vector.broadcast %20 : vector<2x1xf32> to vector<2x256xf32>
      %22 = arith.addf %19, %21 : vector<2x256xf32>
      %cst_12 = arith.constant 0.000000e+00 : f32
      %23 = vector.broadcast %cst_12 : f32 to vector<2x256xf32>
      %24 = arith.maximumf %22, %23 : vector<2x256xf32>
      %25 = vector.broadcast %cst_12 : f32 to vector<2x256xf32>
      %26 = arith.subf %22, %25 : vector<2x256xf32>
      %27 = arith.cmpf one, %26, %26 : vector<2x256xf32>
      %28 = vector.broadcast %cst_12 : f32 to vector<2x256xf32>
      %29 = arith.addf %22, %28 : vector<2x256xf32>
      %30 = math.absf %26 : vector<2x256xf32>
      %cst_13 = arith.constant 0.000000e+00 : f32
      %31 = vector.broadcast %cst_13 : f32 to vector<2x256xf32>
      %32 = arith.subf %31, %30 : vector<2x256xf32>
      %33 = math.exp %32 : vector<2x256xf32>
      %34 = math.log1p %33 : vector<2x256xf32>
      %35 = arith.addf %24, %34 : vector<2x256xf32>
      %36 = arith.select %27, %29, %35 : vector<2x256xi1>, vector<2x256xf32>
      %c0_14 = arith.constant 0 : index
      %c0_15 = arith.constant 0 : index
      %37 = vector.load %arg11[%c0_14, %c0_15] : memref<2x1xf32, #tpu.memory_space<vmem>>, vector<2x1xf32>
      %cst_16 = arith.constant 9.99999997E-7 : f32
      %38 = vector.broadcast %cst_16 : f32 to vector<2x1xf32>
      %39 = arith.addf %37, %38 : vector<2x1xf32>
      %40 = vector.broadcast %39 : vector<2x1xf32> to vector<2x256xf32>
      %41 = arith.mulf %36, %40 : vector<2x256xf32>
      %cst_17 = arith.constant dense<0.000000e+00> : vector<256xf32>
      %42 = vector.multi_reduction <add>, %41, %cst_17 [0] : vector<2x256xf32> to vector<256xf32>
      %43 = vector.shape_cast %42 : vector<256xf32> to vector<1x256xf32>
      %44 = tpu.reciprocal %43 {approx = true} : vector<1x256xf32> -> vector<1x256xf32>
      %c0_18 = arith.constant 0 : index
      %c0_19 = arith.constant 0 : index
      %45 = vector.load %arg10[%c0_18, %c0_19] : memref<16x2xf32, #tpu.memory_space<vmem>>, vector<16x2xf32>
      %46 = vector.extract_strided_slice %45 {offsets = [0, 0], sizes = [16, 1], strides = [1, 1]} : vector<16x2xf32> to vector<16x1xf32>
      %47 = vector.extract_strided_slice %36 {offsets = [0, 0], sizes = [1, 256], strides = [1, 1]} : vector<2x256xf32> to vector<1x256xf32>
      %48 = vector.broadcast %46 : vector<16x1xf32> to vector<16x256xf32>
      %49 = vector.broadcast %47 : vector<1x256xf32> to vector<16x256xf32>
      %50 = arith.mulf %48, %49 : vector<16x256xf32>
      %51 = vector.extract_strided_slice %45 {offsets = [0, 1], sizes = [16, 1], strides = [1, 1]} : vector<16x2xf32> to vector<16x1xf32>
      %52 = vector.extract_strided_slice %36 {offsets = [1, 0], sizes = [1, 256], strides = [1, 1]} : vector<2x256xf32> to vector<1x256xf32>
      %53 = vector.broadcast %51 : vector<16x1xf32> to vector<16x256xf32>
      %54 = vector.broadcast %52 : vector<1x256xf32> to vector<16x256xf32>
      %55 = arith.mulf %53, %54 : vector<16x256xf32>
      %56 = arith.addf %50, %55 : vector<16x256xf32>
      %cst_20 = arith.constant 2.000000e+00 : f32
      %57 = vector.broadcast %cst_20 : f32 to vector<16x256xf32>
      %58 = arith.mulf %57, %12 : vector<16x256xf32>
      %59 = vector.broadcast %44 : vector<1x256xf32> to vector<16x256xf32>
      %60 = arith.mulf %56, %59 : vector<16x256xf32>
      %61 = vector.broadcast %14 : f32 to vector<16x256xf32>
      %62 = arith.mulf %61, %60 : vector<16x256xf32>
      %63 = arith.addf %58, %62 : vector<16x256xf32>
      %64 = vector.broadcast %15 : f32 to vector<16x256xf32>
      %65 = arith.mulf %64, %18 : vector<16x256xf32>
      %66 = arith.addf %63, %65 : vector<16x256xf32>
      %c0_21 = arith.constant 0 : index
      %c0_22 = arith.constant 0 : index
      %c0_23 = arith.constant 0 : index
      %67 = vector.load %arg9[%c0_21, %c0_22, %c0_23] : memref<1x16x256xf32, #tpu.memory_space<vmem>>, vector<1x16x256xf32>
      %68 = vector.shape_cast %67 : vector<1x16x256xf32> to vector<16x256xf32>
      %69 = vector.shape_cast %66 : vector<16x256xf32> to vector<1x16x256xf32>
      tpu.vector_store %arg9[%c0_21, %c0_22, %c0_23], %69 {strides = array<i32>} : memref<1x16x256xf32, #tpu.memory_space<vmem>>, vector<1x16x256xf32>,
    } else {
    }
    return
  }
  func.func @transform_0(%arg0: i32, %arg1: i32, %arg2: i32) -> i32 {
    %c0_i32 = arith.constant 0 : i32
    %c0_i32_0 = arith.constant 0 : i32
    return %c0_i32 : i32
  }
  func.func @transform_1(%arg0: i32, %arg1: i32, %arg2: i32) -> (i32, i32, i32) {
    %c0_i32 = arith.constant 0 : i32
    %c0_i32_0 = arith.constant 0 : i32
    return %arg0, %c0_i32, %arg2 : i32, i32, i32
  }
  func.func @transform_2(%arg0: i32, %arg1: i32, %arg2: i32) -> (i32, i32) {
    %c0_i32 = arith.constant 0 : i32
    %c0_i32_0 = arith.constant 0 : i32
    %c0_i32_1 = arith.constant 0 : i32
    return %c0_i32, %c0_i32_0 : i32, i32
  }
  func.func @transform_3(%arg0: i32, %arg1: i32, %arg2: i32) -> (i32, i32) {
    %c0_i32 = arith.constant 0 : i32
    %c0_i32_0 = arith.constant 0 : i32
    %c0_i32_1 = arith.constant 0 : i32
    return %c0_i32, %c0_i32_0 : i32, i32
  }
  func.func @transform_4(%arg0: i32, %arg1: i32, %arg2: i32) -> (i32, i32) {
    %c0_i32 = arith.constant 0 : i32
    %c0_i32_0 = arith.constant 0 : i32
    %c0_i32_1 = arith.constant 0 : i32
    return %c0_i32, %c0_i32_0 : i32, i32
  }
  func.func @transform_5(%arg0: i32, %arg1: i32, %arg2: i32) -> (i32, i32) {
    %c0_i32 = arith.constant 0 : i32
    %c0_i32_0 = arith.constant 0 : i32
    %c0_i32_1 = arith.constant 0 : i32
    return %c0_i32, %c0_i32_0 : i32, i32
  }
  func.func @transform_6(%arg0: i32, %arg1: i32, %arg2: i32) -> (i32, i32, i32) {
    %0 = arith.muli %arg2, %arg1 : i32
    %c0_i32 = arith.constant 0 : i32
    %c0_i32_0 = arith.constant 0 : i32
    return %arg0, %c0_i32, %0 : i32, i32, i32
  }
}

</mosaic_0001>

<llo_original>
// kernel: tpu_custom_call.1
$region0: #{tpu_custom_call.1}
  #allocation0 [shape = 'u32[]', space=smem, size = 0x4, offset = 0x4, fixed_abs, tag = 'smem constant byte address 0x4 - core index']
  #allocation1 [shape = 'u32[72,128]{1,0:T(1,128)}', space=vmem, size = 0x9000, scoped, tag = 'internal scratch']
  #allocation2 [shape = 'f32[16,2]{1,0:T(8,128)}', space=vmem, size = 0x2000, scoped, tag = 'scratch operand']
  #allocation3 [shape = 'f32[2,1]{1,0:T(2,128)}', space=vmem, size = 0x400, scoped, tag = 'scratch operand']
  #allocation4 [shape = 'f32[16,16]{1,0:T(8,128)}', space=vmem, size = 0x2000, scoped, tag = 'scratch operand']
  #allocation5 [shape = 'bf16[18,16]{1,0:T(8,128)(2,1)}', space=vmem, size = 0x1800, scoped, tag = 'scratch operand']
  %s0 = inlined_call_operand.vmem [shape: f32[2], index: 0, kind: input, shape index: {}]
  %s1 = inlined_call_operand.hbm [shape: f32[2,16,256], index: 1, kind: input, shape index: {}]
  %s2 = inlined_call_operand.vmem [shape: bf16[18,16], index: 2, kind: input, shape index: {}]
  %s3 = inlined_call_operand.vmem [shape: f32[18,1], index: 3, kind: input, shape index: {}]
  %s4 = inlined_call_operand.vmem [shape: bf16[2,16], index: 4, kind: input, shape index: {}]
  %s5 = inlined_call_operand.vmem [shape: f32[2,1], index: 5, kind: input, shape index: {}]
  %s6 = inlined_call_operand.hbm [shape: f32[2,16,256], index: 6, kind: output, shape index: {}]
  %s7 = sld [smem:[#allocation0]]
  $region81: #{tpu_custom_call.1} parent=0
    _
  %s9 = ssub.s32 1, %s7
  %s10 = scalar_select 0, %s9, %s7
  $region1: #{tpu_custom_call.1} parent=0
    #allocation6 [shape = 'u8[512]{0}', space=smem, size = 0x200, scoped, tag = 'input window, operand 0, single buffered']
    #allocation7 [shape = 's32[2]{0}', space=sflag, size = 0x8, scoped, tag = 'scoped memory for tpu_custom_call.1']
    #allocation8 [shape = 's32[2]{0}', space=sflag, size = 0x8, scoped, tag = 'scoped memory for tpu_custom_call.1']
    #allocation9 [shape = 's32[2]{0}', space=sflag, size = 0x8, scoped, tag = 'scoped memory for tpu_custom_call.1']
    #allocation10 [shape = 'u8[32768]{0}', space=vmem, size = 0x8000, scoped, tag = 'input window, operand 1']
    #allocation11 [shape = 'u8[32768]{0}', space=vmem, size = 0x8000, scoped, tag = 'output window, operand 0']
    %11 = vsyncpa [#allocation9], 0
    %12 = vsyncpa [#allocation7], 0
    %s13 = scalar_lea.sflag [#allocation7], 1
    %14 = vsyncpa %s13, 0
    %15 = vsyncpa [#allocation8], 0
    %s16 = scalar_lea.sflag [#allocation8], 1
    %17 = vsyncpa %s16, 0
    loop: start=0, step=1, limit=6
    $region2: #{tpu_custom_call.1} parent=1 // loop_pre_header
      _
    $region3: #{tpu_custom_call.1} parent=1 // loop_header
      %s19 = sphi 0, %s23
      %p20 = scmp.ge.s32.totalorder %s19, 6
      %s26 = sphi 0, %s45
      %s27 = sphi 0, %s41
      %s28 = sphi 0, %s37
      %s29 = sphi 0, %s26
      %s30 = sphi 0, %s27
      %s31 = sphi 0, %s28
      %s32 = sphi 0, %s29
      %s33 = sphi 0, %s30
      %s34 = sphi 0, %s31
      %s46 = sphi 0, %s46
      %s48 = sphi 0, %s46
      %s49 = sphi 0, %s48
      %s63 = sphi 0, %s49
      %s71 = sphi 0, %s73
      %s74 = sphi 0, %s71
      %s75 = sphi 0, %s74
      %s91 = sphi 0, %s75
      %s95 = sphi 0, %s95
      %s97 = sphi 0, %s95
      %s98 = sphi 0, %s97
      %s112 = sphi 0, %s98
      %s116 = sphi 0, %s116
      %s118 = sphi 0, %s116
      %s119 = sphi 0, %s118
      %s133 = sphi 0, %s119
      %s137 = sphi 0, %s137
      %s139 = sphi 0, %s137
      %s140 = sphi 0, %s139
      %s154 = sphi 0, %s140
      %s158 = sphi 0, %s158
      %s160 = sphi 0, %s158
      %s161 = sphi 0, %s160
      %s175 = sphi 0, %s161
      %s185 = sphi 0, %s187
      %s188 = sphi 0, %s185
      %s189 = sphi 0, %s188
      %s205 = sphi 0, %s189
    $region4: #{tpu_custom_call.1} parent=1 // loop_header_branch
      %22 = sbr.rel (%p20) target = $region8
    $region5: #{tpu_custom_call.1} parent=1 // loop_body
      %s24 = ssub.s32 %s19, 1
      %s25 = ssub.s32 %s19, 2
      %s35 = sadd.s32 1, %s28
      %p36 = scmp.ge.s32.totalorder %s35, 1
      %s37 = scalar_select %p36, 0, %s35
      %s38 = sadd.s32 1, %s27
      %s39 = scalar_select %p36, %s38, %s27
      %p40 = scmp.ge.s32.totalorder %s39, 2
      %s41 = scalar_select %p40, 0, %s39
      %s42 = sadd.s32 1, %s26
      %s43 = scalar_select %p40, %s42, %s26
      %p44 = scmp.ge.s32.totalorder %s43, 2
      %s45 = scalar_select %p44, 0, %s43
      %s47 = sadd.s32 %s46, 1
      %p50 = scmp.eq.s32.totalorder %s19, 3
      %p51 = scmp.ne.s32.totalorder %s46, %s48
      %p52 = scmp.eq.s32.totalorder %s19, 0
      %p53 = por %p51, %p52
      %p54 = scmp.ne.s32.totalorder %s46, %s48
      %p55 = scmp.eq.s32.totalorder %s24, 3
      %p56 = por %p54, %p55
      %p57 = scmp.ne.s32.totalorder %s48, %s49
      %p58 = scmp.eq.s32.totalorder %s24, 0
      %p59 = por %p57, %p58
      %p60 = scmp.ne.s32.totalorder %s48, %s49
      %p61 = scmp.eq.s32.totalorder %s25, 3
      %p62 = por %p60, %p61
      %p64 = scmp.ne.s32.totalorder %s49, %s63
      %p65 = scmp.eq.s32.totalorder %s25, 0
      %p66 = por %p64, %p65
      %s67 = ssub.s32 %s26, %s45
      %s68 = ssub.s32 %s28, %s37
      %s69 = sor.u32 %s67, %s68
      %p70 = scmp.eq.s32.totalorder %s69, 0
      %s72 = sadd.s32 %s71, 1
      %s73 = scalar_select %p70, %s71, %s72
      %p76 = pneg %p70
      %p77 = scmp.eq.s32.totalorder %s19, 3
      %p78 = por %p76, %p77
      %p79 = scmp.ne.s32.totalorder %s71, %s74
      %p80 = scmp.eq.s32.totalorder %s19, 0
      %p81 = por %p79, %p80
      %p82 = scmp.ne.s32.totalorder %s71, %s74
      %p83 = scmp.eq.s32.totalorder %s24, 3
      %p84 = por %p82, %p83
      %p85 = scmp.ne.s32.totalorder %s74, %s75
      %p86 = scmp.eq.s32.totalorder %s24, 0
      %p87 = por %p85, %p86
      %p88 = scmp.ne.s32.totalorder %s74, %s75
      %p89 = scmp.eq.s32.totalorder %s25, 3
      %p90 = por %p88, %p89
      %p92 = scmp.ne.s32.totalorder %s75, %s91
      %p93 = scmp.eq.s32.totalorder %s25, 0
      %p94 = por %p92, %p93
      %s96 = sadd.s32 %s95, 1
      %p99 = scmp.eq.s32.totalorder %s19, 3
      %p100 = scmp.ne.s32.totalorder %s95, %s97
      %p101 = scmp.eq.s32.totalorder %s19, 0
      %p102 = por %p100, %p101
      %p103 = scmp.ne.s32.totalorder %s95, %s97
      %p104 = scmp.eq.s32.totalorder %s24, 3
      %p105 = por %p103, %p104
      %p106 = scmp.ne.s32.totalorder %s97, %s98
      %p107 = scmp.eq.s32.totalorder %s24, 0
      %p108 = por %p106, %p107
      %p109 = scmp.ne.s32.totalorder %s97, %s98
      %p110 = scmp.eq.s32.totalorder %s25, 3
      %p111 = por %p109, %p110
      %p113 = scmp.ne.s32.totalorder %s98, %s112
      %p114 = scmp.eq.s32.totalorder %s25, 0
      %p115 = por %p113, %p114
      %s117 = sadd.s32 %s116, 1
      %p120 = scmp.eq.s32.totalorder %s19, 3
      %p121 = scmp.ne.s32.totalorder %s116, %s118
      %p122 = scmp.eq.s32.totalorder %s19, 0
      %p123 = por %p121, %p122
      %p124 = scmp.ne.s32.totalorder %s116, %s118
      %p125 = scmp.eq.s32.totalorder %s24, 3
      %p126 = por %p124, %p125
      %p127 = scmp.ne.s32.totalorder %s118, %s119
      %p128 = scmp.eq.s32.totalorder %s24, 0
      %p129 = por %p127, %p128
      %p130 = scmp.ne.s32.totalorder %s118, %s119
      %p131 = scmp.eq.s32.totalorder %s25, 3
      %p132 = por %p130, %p131
      %p134 = scmp.ne.s32.totalorder %s119, %s133
      %p135 = scmp.eq.s32.totalorder %s25, 0
      %p136 = por %p134, %p135
      %s138 = sadd.s32 %s137, 1
      %p141 = scmp.eq.s32.totalorder %s19, 3
      %p142 = scmp.ne.s32.totalorder %s137, %s139
      %p143 = scmp.eq.s32.totalorder %s19, 0
      %p144 = por %p142, %p143
      %p145 = scmp.ne.s32.totalorder %s137, %s139
      %p146 = scmp.eq.s32.totalorder %s24, 3
      %p147 = por %p145, %p146
      %p148 = scmp.ne.s32.totalorder %s139, %s140
      %p149 = scmp.eq.s32.totalorder %s24, 0
      %p150 = por %p148, %p149
      %p151 = scmp.ne.s32.totalorder %s139, %s140
      %p152 = scmp.eq.s32.totalorder %s25, 3
      %p153 = por %p151, %p152
      %p155 = scmp.ne.s32.totalorder %s140, %s154
      %p156 = scmp.eq.s32.totalorder %s25, 0
      %p157 = por %p155, %p156
      %s159 = sadd.s32 %s158, 1
      %p162 = scmp.eq.s32.totalorder %s19, 3
      %p163 = scmp.ne.s32.totalorder %s158, %s160
      %p164 = scmp.eq.s32.totalorder %s19, 0
      %p165 = por %p163, %p164
      %p166 = scmp.ne.s32.totalorder %s158, %s160
      %p167 = scmp.eq.s32.totalorder %s24, 3
      %p168 = por %p166, %p167
      %p169 = scmp.ne.s32.totalorder %s160, %s161
      %p170 = scmp.eq.s32.totalorder %s24, 0
      %p171 = por %p169, %p170
      %p172 = scmp.ne.s32.totalorder %s160, %s161
      %p173 = scmp.eq.s32.totalorder %s25, 3
      %p174 = por %p172, %p173
      %p176 = scmp.ne.s32.totalorder %s161, %s175
      %p177 = scmp.eq.s32.totalorder %s25, 0
      %p178 = por %p176, %p177
      %s179 = smul.u32 %s28, %s27
      %s180 = smul.u32 %s37, %s41
      %s181 = ssub.s32 %s26, %s45
      %s182 = ssub.s32 %s179, %s180
      %s183 = sor.u32 %s181, %s182
      %p184 = scmp.eq.s32.totalorder %s183, 0
      %s186 = sadd.s32 %s185, 1
      %s187 = scalar_select %p184, %s185, %s186
      %p190 = pneg %p184
      %p191 = scmp.eq.s32.totalorder %s19, 3
      %p192 = por %p190, %p191
      %p193 = scmp.ne.s32.totalorder %s185, %s188
      %p194 = scmp.eq.s32.totalorder %s19, 0
      %p195 = por %p193, %p194
      %p196 = scmp.ne.s32.totalorder %s185, %s188
      %p197 = scmp.eq.s32.totalorder %s24, 3
      %p198 = por %p196, %p197
      %p199 = scmp.ne.s32.totalorder %s188, %s189
      %p200 = scmp.eq.s32.totalorder %s24, 0
      %p201 = por %p199, %p200
      %p202 = scmp.ne.s32.totalorder %s188, %s189
      %p203 = scmp.eq.s32.totalorder %s25, 3
      %p204 = por %p202, %p203
      %p206 = scmp.ne.s32.totalorder %s189, %s205
      %p207 = scmp.eq.s32.totalorder %s25, 0
      %p208 = por %p206, %p207
      %p209 = scmp.le.s32.totalorder 1, %s19
      %p210 = scmp.lt.s32.totalorder %s19, 5
      %p211 = pnand %p209, %p210
      %p212 = pneg %p211
      // Predicated region
      $region9: #{tpu_custom_call.1} parent=5 // pred_check
        _
      $region10: #{tpu_custom_call.1} parent=5 // pred_check_branch
        %214 = sbr.rel (%p211) target = $region12
      $region11: #{tpu_custom_call.1} parent=5 // pred_region
        %s215 = ssub.s32 %s19, 1
        // Predicated region
        $region13: #{tpu_custom_call.1} parent=11 // pred_check
          %p216 = pneg %p59
        $region14: #{tpu_custom_call.1} parent=11 // pred_check_branch
          %218 = sbr.rel (%p216) target = $region16
        $region15: #{tpu_custom_call.1} parent=11 // pred_region
          %220 = vsyncadd [#allocation9], 0
          %s222 = sshll.u32 %s0, 4
          %s223 = int_to_ptr.vmem [resolvable:$true] %s222
          %225 = dma.vmem_to_smem %s223, 16, [#allocation6], [#allocation9]
        $region16: #{tpu_custom_call.1} parent=11 // pred_fallthru
          _
        // Predicated region
        $region17: #{tpu_custom_call.1} parent=11 // pred_check
          %p226 = pneg %p108
        $region18: #{tpu_custom_call.1} parent=11 // pred_check_branch
          %228 = sbr.rel (%p226) target = $region20
        $region19: #{tpu_custom_call.1} parent=11 // pred_region
          _
        $region20: #{tpu_custom_call.1} parent=11 // pred_fallthru
          _
        // Predicated region
        $region21: #{tpu_custom_call.1} parent=11 // pred_check
          %p229 = pneg %p129
        $region22: #{tpu_custom_call.1} parent=11 // pred_check_branch
          %231 = sbr.rel (%p229) target = $region24
        $region23: #{tpu_custom_call.1} parent=11 // pred_region
          _
        $region24: #{tpu_custom_call.1} parent=11 // pred_fallthru
          _
        // Predicated region
        $region25: #{tpu_custom_call.1} parent=11 // pred_check
          %p232 = pneg %p150
        $region26: #{tpu_custom_call.1} parent=11 // pred_check_branch
          %234 = sbr.rel (%p232) target = $region28
        $region27: #{tpu_custom_call.1} parent=11 // pred_region
          _
        $region28: #{tpu_custom_call.1} parent=11 // pred_fallthru
          _
        // Predicated region
        $region29: #{tpu_custom_call.1} parent=11 // pred_check
          %p235 = pneg %p171
        $region30: #{tpu_custom_call.1} parent=11 // pred_check_branch
          %237 = sbr.rel (%p235) target = $region32
        $region31: #{tpu_custom_call.1} parent=11 // pred_region
          _
        $region32: #{tpu_custom_call.1} parent=11 // pred_fallthru
          _
      $region12: #{tpu_custom_call.1} parent=5 // pred_fallthru
        _
      %p238 = scmp.lt.s32.totalorder %s19, 4
      // Predicated region
      $region33: #{tpu_custom_call.1} parent=5 // pred_check
        %p239 = pneg %p238
      $region34: #{tpu_custom_call.1} parent=5 // pred_check_branch
        %241 = sbr.rel (%p239) target = $region36
      $region35: #{tpu_custom_call.1} parent=5 // pred_region
        // Predicated region
        $region37: #{tpu_custom_call.1} parent=35 // pred_check
          %p242 = pneg %p81
        $region38: #{tpu_custom_call.1} parent=35 // pred_check_branch
          %244 = sbr.rel (%p242) target = $region40
        $region39: #{tpu_custom_call.1} parent=35 // pred_region
          %s245 = sand.u32 %s71, 1
          %s246 = scalar_lea.sflag [#allocation7], %s245
          %s247 = sand.u32 %s71, 1
          %s248 = smul.addr %s247, 32
          %s249 = scalar_lea.vmem [#allocation10], %s248
          %s250 = smul.u32 2, %s28
          %252 = vsyncadd %s246, 0
          %s253 = smul.addr %s26, 4
          %s254 = sadd.s32 %s250, %s253
          %s255 = smul.addr %s254, 8
          %s256 = scalar_lea.hbm %s1, %s255
          %s257 = sshll.u32 %s256, 4
          %s258 = int_to_ptr.hbm [resolvable:$true] %s257
          %s259 = sshll.u32 %s249, 4
          %s260 = int_to_ptr.vmem [resolvable:$true] %s259
          %265 = dma.hbm_to_vmem [thread:$0]  %s258, 512, %s260, %s246, 256, 256, 16
        $region40: #{tpu_custom_call.1} parent=35 // pred_fallthru
          _
      $region36: #{tpu_custom_call.1} parent=5 // pred_fallthru
        _
      %p266 = scmp.le.s32.totalorder 1, %s19
      %p267 = scmp.lt.s32.totalorder %s19, 5
      %p268 = pnand %p266, %p267
      %p269 = pneg %p268
      // Predicated region
      $region41: #{tpu_custom_call.1} parent=5 // pred_check
        _
      $region42: #{tpu_custom_call.1} parent=5 // pred_check_branch
        %271 = sbr.rel (%p268) target = $region44
      $region43: #{tpu_custom_call.1} parent=5 // pred_region
        %s272 = ssub.s32 %s19, 1
        // Predicated region
        $region45: #{tpu_custom_call.1} parent=43 // pred_check
          %p273 = pneg %p59
        $region46: #{tpu_custom_call.1} parent=43 // pred_check_branch
          %275 = sbr.rel (%p273) target = $region48
        $region47: #{tpu_custom_call.1} parent=43 // pred_region
          %277 = dma.done [#allocation9], 16
        $region48: #{tpu_custom_call.1} parent=43 // pred_fallthru
          _
        %s278 = sand.u32 %s74, 1
        %s279 = scalar_lea.sflag [#allocation7], %s278
        %s280 = sand.u32 %s74, 1
        %s281 = smul.addr %s280, 32
        %s282 = scalar_lea.vmem [#allocation10], %s281
        // Predicated region
        $region49: #{tpu_custom_call.1} parent=43 // pred_check
          %p283 = pneg %p87
        $region50: #{tpu_custom_call.1} parent=43 // pred_check_branch
          %285 = sbr.rel (%p283) target = $region52
        $region51: #{tpu_custom_call.1} parent=43 // pred_region
          %287 = dma.done %s279, 512
        $region52: #{tpu_custom_call.1} parent=43 // pred_fallthru
          _
        %288 = sfence
        %p289 = pneg %p59
        %p290 = pneg %p56
        %s291 = sand.u32 %s74, 1
        %s292 = scalar_lea.sflag [#allocation7], %s291
        %s293 = sand.u32 %s74, 1
        %s294 = smul.addr %s293, 32
        %s295 = scalar_lea.vmem [#allocation10], %s294
        %p296 = pneg %p87
        %p297 = pneg %p84
        %p298 = pneg %p108
        %p299 = pneg %p105
        %p300 = pneg %p129
        %p301 = pneg %p126
        %p302 = pneg %p150
        %p303 = pneg %p147
        %p304 = pneg %p171
        %p305 = pneg %p168
        %p306 = pneg %p201
        %p307 = pneg %p198
        %s308 = sand.u32 %s188, 1
        %s309 = scalar_lea.sflag [#allocation8], %s308
        %s310 = sand.u32 %s188, 1
        %s311 = smul.addr %s310, 32
        %s312 = scalar_lea.vmem [#allocation11], %s311
        %s313 = smul.u32 2, %s31
        %s314 = smul.u32 %s31, %s30
        %s315 = smul.u32 2, %s314
        %p317 = scmp.eq.s32.totalorder %s30, 0
        %p318 = scmp.eq.s32.totalorder %s31, 0
        %p319 = pnand %p317, %p318
        %p320 = pneg %p319
        // Predicated region
        $region53: #{tpu_custom_call.1} parent=43 // pred_check
          _
        $region54: #{tpu_custom_call.1} parent=43 // pred_check_branch
          %322 = sbr.rel (%p319) target = $region56
        $region55: #{tpu_custom_call.1} parent=43 // pred_region
          %vm323 = vcmask 15360
          %324 = vst.msk [vmem:[#allocation2] sm:$0xff] %vm323, 0.0
          %325 = vst.msk [vmem:[#allocation2 + $0x8] sm:$0xff] %vm323, 0.0
          %vm326 = vcmask 1024
          %327 = vst.msk [vmem:[#allocation3] sm:$0x3] %vm326, 0.0
          %vm328 = vcmask 130048
          %329 = vst.msk [vmem:[#allocation4] sm:$0xff] %vm328, 0.0
          %330 = vst.msk [vmem:[#allocation4 + $0x8] sm:$0xff] %vm328, 0.0
          %v331 = vld [vmem:[%s4] sm:$0x1]
          %vm332 = vcmask 122880
          %333 = vst.msk [vmem:[#allocation5 + $0x8] sm:$0x1] %vm332, %v331
        $region56: #{tpu_custom_call.1} parent=43 // pred_fallthru
          _
        // Predicated region
        $region57: #{tpu_custom_call.1} parent=43 // pred_check
          %p334 = pneg %p317
        $region58: #{tpu_custom_call.1} parent=43 // pred_check_branch
          %336 = sbr.rel (%p334) target = $region60
        $region59: #{tpu_custom_call.1} parent=43 // pred_region
          %v337 = vld [vmem:[%s282] sm:$0xff]
          %v338 = vld [vmem:[%s282 + $0x8] sm:$0xff]
          %v339 = vld [vmem:[%s282 + $0x10] sm:$0xff]
          %v340 = vld [vmem:[%s282 + $0x18] sm:$0xff]
          %v341 = vpack.c.bf16 %v339, %v337
          %v342 = vpack.c.bf16 %v340, %v338
          %v343 = vld [vmem:[%s2] sm:$0xf]
          %v344 = vld [vmem:[%s2 + $0x4] sm:$0xf]
          %v345 = vld [vmem:[%s2 + $0x8] sm:$0x1]
          %v346 = vld [vmem:[%s3] sm:$0xff]
          %v347 = vld [vmem:[%s3 + $0x8] sm:$0xff]
          %v348 = vld [vmem:[%s3 + $0x10] sm:$0x3]
          %350 = vset.pattern.permute.xlu0 0
          %351 = vperm.xlu0 %350, %v346
          %v352 = vpop.permute.xlu0 %351
          %355 = vset.pattern.permute.xlu0 0
          %356 = vperm.xlu0 %355, %v347
          %v357 = vpop.permute.xlu0 %356
          %360 = vset.pattern.permute.xlu0 0
          %361 = vperm.xlu0 %360, %v348
          %v362 = vpop.permute.xlu0 %361
          %v367 = vunpack.c.l.b16 %v343
          %v368 = vunpack.c.l.b16 %v344
          %v369 = vunpack.c.l.b16 %v345
          %v370 = vpack.c.b16 %v368, %v367
          %v371 = vpack.c.b16 %v369, %v369
          %vm372 = vcmask 130048
          %v374 = vsel %vm372, %v370, 0
          %v377 = vsel %vm372, %v371, 0
          %379 = vmatpush.bf16.msra.mxu0 0
          %380 = vmatpush.bf16.msra.mxu0 0
          %381 = vmatpush.bf16.msra.mxu0 0
          %382 = vmatpush.bf16.msra.mxu0 0
          %383 = vmatpush.bf16.msra.mxu0 0
          %384 = vmatpush.bf16.msra.mxu0 0
          %385 = vmatpush.bf16.msra.mxu0 0
          %386 = vmatpush.bf16.msra.mxu0 %v341
          %387 = vmatmul.bf16.gmra.mxu0 %v374
          %v388 = vpop.f32.mrf.mxu0
          %v389 = vadd.f32 %v352, %v388
          %v390 = vpop.f32.mrf.mxu0
          %v391 = vadd.f32 %v357, %v390
          %392 = vmatmul.bf16.gmra.mxu0 %v377
          %v393 = vpop.f32.mrf.mxu0
          %v394 = vadd.f32 %v362, %v393
          %v395 = vpop.f32.mrf.mxu0
          %396 = vdwg.mxu0
          %397 = vmatpush.bf16.msra.mxu0 0
          %398 = vmatpush.bf16.msra.mxu0 0
          %399 = vmatpush.bf16.msra.mxu0 0
          %400 = vmatpush.bf16.msra.mxu0 0
          %401 = vmatpush.bf16.msra.mxu0 0
          %402 = vmatpush.bf16.msra.mxu0 0
          %403 = vmatpush.bf16.msra.mxu0 0
          %404 = vmatpush.bf16.msra.mxu0 %v342
          %405 = vmatmul.bf16.gmra.mxu0 %v374
          %v406 = vpop.f32.mrf.mxu0
          %v407 = vadd.f32 %v352, %v406
          %v408 = vpop.f32.mrf.mxu0
          %v409 = vadd.f32 %v357, %v408
          %410 = vmatmul.bf16.gmra.mxu0 %v377
          %v411 = vpop.f32.mrf.mxu0
          %v412 = vadd.f32 %v362, %v411
          %v413 = vpop.f32.mrf.mxu0
          %414 = vdwg.mxu0
          %v415 = vmax.f32 %v394, 0.0
          %v416 = vmax.f32 %v412, 0.0
          %vm417 = vcmp.ne.f32.partialorder %v394, %v394
          %vm418 = vcmp.ne.f32.partialorder %v412, %v412
          %v419 = vadd.f32 %v394, 0.0
          %v420 = vadd.f32 %v412, 0.0
          %v421 = vand.u32 2147483647, %v394
          %v422 = vand.u32 2147483647, %v412
          %v423 = vsub.f32 0.0, %v421
          %v424 = vsub.f32 0.0, %v422
          %v425 = vmul.f32 %v423, 1.442695
          %v426 = vpow.pop %v425
          %v427 = vmul.f32 %v424, 1.442695
          %v428 = vpow.pop %v427
          %v429 = vadd.f32 %v426, 1.0
          %v430 = vlog2.pop %v429
          %v431 = vmul.f32 %v430, 0.6931472
          %v432 = vmul.f32 -0.5, %v426
          %v433 = vadd.f32 %v432, 1.0
          %v434 = vmul.f32 %v433, %v426
          %v435 = vand.u32 2147483647, %v426
          %vm436 = vcmp.lt.f32.partialorder %v435, 0.0004427343
          %v437 = vsel %vm436, %v434, %v431
          %v438 = vadd.f32 %v428, 1.0
          %v439 = vlog2.pop %v438
          %v440 = vmul.f32 %v439, 0.6931472
          %v441 = vmul.f32 -0.5, %v428
          %v442 = vadd.f32 %v441, 1.0
          %v443 = vmul.f32 %v442, %v428
          %v444 = vand.u32 2147483647, %v428
          %vm445 = vcmp.lt.f32.partialorder %v444, 0.0004427343
          %v446 = vsel %vm445, %v443, %v440
          %v447 = vadd.f32 %v415, %v437
          %v448 = vadd.f32 %v416, %v446
          %v449 = vsel %vm417, %v419, %v447
          %v450 = vsel %vm418, %v420, %v448
          %v451 = vld [vmem:[#allocation2] sm:$0xff]
          %v452 = vld [vmem:[#allocation2 + $0x8] sm:$0xff]
          %v453 = vpack.c.bf16 %v391, %v389
          %v454 = vpack.c.bf16 %v409, %v407
          %v455 = vpack.c.bf16 %v449, %v449
          %v456 = vpack.c.bf16 %v450, %v450
          %457 = vmatpush.bf16.xpose.msra.mxu0 0
          %458 = vmatpush.bf16.xpose.msra.mxu0 0
          %459 = vmatpush.bf16.xpose.msra.mxu0 0
          %460 = vmatpush.bf16.xpose.msra.mxu0 0
          %461 = vmatpush.bf16.xpose.msra.mxu0 0
          %462 = vmatpush.bf16.xpose.msra.mxu0 0
          %463 = vmatpush.bf16.xpose.msra.mxu0 0
          %464 = vmatpush.bf16.xpose.msra.mxu0 %v455
          %465 = vmatmul.bf16.gmra.mxu0 %v453
          %v466 = vpop.f32.mrf.mxu0
          %v467 = vadd.f32 0.0, %v466
          %v468 = vpop.f32.mrf.mxu0
          %v469 = vadd.f32 0.0, %v468
          %470 = vdwg.mxu0
          %471 = vmatpush.bf16.xpose.msra.mxu0 0
          %472 = vmatpush.bf16.xpose.msra.mxu0 0
          %473 = vmatpush.bf16.xpose.msra.mxu0 0
          %474 = vmatpush.bf16.xpose.msra.mxu0 0
          %475 = vmatpush.bf16.xpose.msra.mxu0 0
          %476 = vmatpush.bf16.xpose.msra.mxu0 0
          %477 = vmatpush.bf16.xpose.msra.mxu0 0
          %478 = vmatpush.bf16.xpose.msra.mxu0 %v456
          %479 = vmatmul.bf16.gmra.mxu0 %v454
          %v480 = vpop.f32.mrf.mxu0
          %v481 = vadd.f32 %v467, %v480
          %v482 = vpop.f32.mrf.mxu0
          %v483 = vadd.f32 %v469, %v482
          %484 = vdwg.mxu0
          %v485 = vadd.f32 %v451, %v481
          %v486 = vadd.f32 %v452, %v483
          %vm487 = vcmask 15360
          %488 = vst.msk [vmem:[#allocation2] sm:$0xff] %vm487, %v485
          %489 = vst.msk [vmem:[#allocation2 + $0x8] sm:$0xff] %vm487, %v486
          %v490 = vld [vmem:[#allocation3] sm:$0x3]
          %vm491 = vcmask 1041408
          %v492 = vsel %vm491, %v449, 0.0
          %v493 = vsel %vm491, %v450, 0.0
          %v494 = vadd.f32 %v492, %v493
          %495 = vadd.xlane.f32.xlu0 %v494
          %v496 = vpop.xlane.xlu0 %495
          %v497 = vadd.f32 %v490, %v496
          %vm498 = vcmask 1024
          %499 = vst.msk [vmem:[#allocation3] sm:$0x3] %vm498, %v497
          %v500 = vld [vmem:[#allocation4] sm:$0xff]
          %v501 = vld [vmem:[#allocation4 + $0x8] sm:$0xff]
          %502 = vmatpush.xpose.msra.mxu0 0.0
          %503 = vmatpush.xpose.msra.mxu0 0.0
          %504 = vmatpush.xpose.msra.mxu0 0.0
          %505 = vmatpush.xpose.msra.mxu0 0.0
          %506 = vmatpush.xpose.msra.mxu0 0.0
          %507 = vmatpush.xpose.msra.mxu0 0.0
          %508 = vmatpush.xpose.msra.mxu0 0.0
          %509 = vmatpush.xpose.msra.mxu0 0.0
          %510 = vmatpush.xpose.msra.mxu0 0.0
          %511 = vmatpush.xpose.msra.mxu0 0.0
          %512 = vmatpush.xpose.msra.mxu0 0.0
          %513 = vmatpush.xpose.msra.mxu0 0.0
          %514 = vmatpush.xpose.msra.mxu0 0.0
          %515 = vmatpush.xpose.msra.mxu0 0.0
          %516 = vmatpush.xpose.msra.mxu0 %v339
          %517 = vmatpush.xpose.msra.mxu0 %v337
          %518 = vmatmul.f32.gmra.mxu0 %v337
          %v519 = vpop.f32.mrf.mxu0
          %v520 = vadd.f32 0.0, %v519
          %521 = vmatmul.f32.gmra.mxu0 %v339
          %v522 = vpop.f32.mrf.mxu0
          %v523 = vadd.f32 0.0, %v522
          %524 = vdwg.mxu0
          %525 = vmatpush.xpose.msra.mxu0 0.0
          %526 = vmatpush.xpose.msra.mxu0 0.0
          %527 = vmatpush.xpose.msra.mxu0 0.0
          %528 = vmatpush.xpose.msra.mxu0 0.0
          %529 = vmatpush.xpose.msra.mxu0 0.0
          %530 = vmatpush.xpose.msra.mxu0 0.0
          %531 = vmatpush.xpose.msra.mxu0 0.0
          %532 = vmatpush.xpose.msra.mxu0 0.0
          %533 = vmatpush.xpose.msra.mxu0 0.0
          %534 = vmatpush.xpose.msra.mxu0 0.0
          %535 = vmatpush.xpose.msra.mxu0 0.0
          %536 = vmatpush.xpose.msra.mxu0 0.0
          %537 = vmatpush.xpose.msra.mxu0 0.0
          %538 = vmatpush.xpose.msra.mxu0 0.0
          %539 = vmatpush.xpose.msra.mxu0 %v340
          %540 = vmatpush.xpose.msra.mxu0 %v338
          %541 = vmatmul.f32.gmra.mxu0 %v338
          %v542 = vpop.f32.mrf.mxu0
          %v543 = vadd.f32 %v520, %v542
          %544 = vmatmul.f32.gmra.mxu0 %v340
          %v545 = vpop.f32.mrf.mxu0
          %v546 = vadd.f32 %v523, %v545
          %547 = vdwg.mxu0
          %v548 = vadd.f32 %v500, %v543
          %v549 = vadd.f32 %v501, %v546
          %550 = vst.msk [vmem:[#allocation4] sm:$0xff] %vm372, %v548
          %551 = vst.msk [vmem:[#allocation4 + $0x8] sm:$0xff] %vm372, %v549
          // Predicated region
          $region61: #{tpu_custom_call.1} parent=59 // pred_check
            %p552 = pneg %p318
          $region62: #{tpu_custom_call.1} parent=59 // pred_check_branch
            %554 = sbr.rel (%p552) target = $region64
          $region63: #{tpu_custom_call.1} parent=59 // pred_region
            %v555 = vld [vmem:[#allocation4] sm:$0xff]
            %v556 = vld [vmem:[#allocation4 + $0x8] sm:$0xff]
            %v557 = vsel %vm372, %v555, inf
            %558 = vmin.xlane.f32.xlu0 %v557
            %v559 = vpop.xlane.xlu0 %558
            %v560 = vsel %vm372, %v556, inf
            %561 = vmin.xlane.f32.xlu0 %v560
            %v562 = vpop.xlane.xlu0 %561
            %v563 = vsub.f32 %v559, %v555
            %v564 = vsub.f32 %v562, %v556
            %v565 = vmul.f32 %v563, 1.442695
            %v566 = vpow.pop %v565
            %v567 = vmul.f32 %v564, 1.442695
            %v568 = vpow.pop %v567
            %v569 = vsel %vm372, %v566, 0.0
            %570 = vadd.xlane.f32.xlu0 %v569
            %v571 = vpop.xlane.xlu0 %570
            %v572 = vsel %vm372, %v568, 0.0
            %573 = vadd.xlane.f32.xlu0 %v572
            %v574 = vpop.xlane.xlu0 %573
            %v575 = vrcp.pop %v571
            %v576 = vrcp.pop %v574
            %v577 = vmul.f32 %v566, %v575
            %v578 = vmul.f32 %v568, %v576
            %v579 = vpack.c.bf16 %v577, %v577
            %v580 = vpack.c.bf16 %v578, %v578
            %vm581 = vcmask 125952
            %582 = vst.msk [vmem:[#allocation5] sm:$0xf] %vm581, %v579
            %583 = vst.msk [vmem:[#allocation5 + $0x4] sm:$0xf] %vm581, %v580
          $region64: #{tpu_custom_call.1} parent=59 // pred_fallthru
            _
        $region60: #{tpu_custom_call.1} parent=43 // pred_fallthru
          _
        %p584 = scmp.eq.s32.totalorder %s30, 1
        // Predicated region
        $region65: #{tpu_custom_call.1} parent=43 // pred_check
          %p585 = pneg %p584
        $region66: #{tpu_custom_call.1} parent=43 // pred_check_branch
          %587 = sbr.rel (%p585) target = $region68
        $region67: #{tpu_custom_call.1} parent=43 // pred_region
          %v588 = vld [vmem:[%s282] sm:$0xff]
          %v589 = vld [vmem:[%s282 + $0x8] sm:$0xff]
          %v590 = vld [vmem:[%s282 + $0x10] sm:$0xff]
          %v591 = vld [vmem:[%s282 + $0x18] sm:$0xff]
          %v592 = vpack.c.bf16 %v590, %v588
          %v593 = vpack.c.bf16 %v591, %v589
          %s594 = sld [smem:[#allocation6]]
          %s595 = sld [smem:[#allocation6 + $0x1]]
          %v596 = vld [vmem:[#allocation5] sm:$0xf]
          %v597 = vld [vmem:[#allocation5 + $0x4] sm:$0xf]
          %v598 = vld [vmem:[#allocation5 + $0x8] sm:$0x1]
          %v602 = vunpack.c.l.b16 %v596
          %v603 = vunpack.c.l.b16 %v597
          %v604 = vunpack.c.l.b16 %v598
          %v605 = vpack.c.b16 %v603, %v602
          %v606 = vpack.c.b16 %v604, %v604
          %vm607 = vcmask 130048
          %v609 = vsel %vm607, %v605, 0
          %v612 = vsel %vm607, %v606, 0
          %614 = vmatpush.bf16.msra.mxu0 0
          %615 = vmatpush.bf16.msra.mxu0 0
          %616 = vmatpush.bf16.msra.mxu0 0
          %617 = vmatpush.bf16.msra.mxu0 0
          %618 = vmatpush.bf16.msra.mxu0 0
          %619 = vmatpush.bf16.msra.mxu0 0
          %620 = vmatpush.bf16.msra.mxu0 0
          %621 = vmatpush.bf16.msra.mxu0 %v592
          %622 = vmatmul.bf16.gmra.mxu0 %v609
          %v623 = vpop.f32.mrf.mxu0
          %v624 = vadd.f32 0.0, %v623
          %v625 = vpop.f32.mrf.mxu0
          %v626 = vadd.f32 0.0, %v625
          %627 = vmatmul.bf16.gmra.mxu0 %v612
          %v628 = vpop.f32.mrf.mxu0
          %v629 = vadd.f32 0.0, %v628
          %v630 = vpop.f32.mrf.mxu0
          %631 = vdwg.mxu0
          %632 = vmatpush.bf16.msra.mxu0 0
          %633 = vmatpush.bf16.msra.mxu0 0
          %634 = vmatpush.bf16.msra.mxu0 0
          %635 = vmatpush.bf16.msra.mxu0 0
          %636 = vmatpush.bf16.msra.mxu0 0
          %637 = vmatpush.bf16.msra.mxu0 0
          %638 = vmatpush.bf16.msra.mxu0 0
          %639 = vmatpush.bf16.msra.mxu0 %v593
          %640 = vmatmul.bf16.gmra.mxu0 %v609
          %v641 = vpop.f32.mrf.mxu0
          %v642 = vadd.f32 0.0, %v641
          %v643 = vpop.f32.mrf.mxu0
          %v644 = vadd.f32 0.0, %v643
          %645 = vmatmul.bf16.gmra.mxu0 %v612
          %v646 = vpop.f32.mrf.mxu0
          %v647 = vadd.f32 0.0, %v646
          %v648 = vpop.f32.mrf.mxu0
          %649 = vdwg.mxu0
          %v650 = vld [vmem:[%s5] sm:$0x3]
          %652 = vset.pattern.permute.xlu0 0
          %653 = vperm.xlu0 %652, %v650
          %v654 = vpop.permute.xlu0 %653
          %v656 = vadd.f32 %v629, %v654
          %v657 = vadd.f32 %v647, %v654
          %v658 = vmax.f32 %v656, 0.0
          %v659 = vmax.f32 %v657, 0.0
          %vm660 = vcmp.ne.f32.partialorder %v656, %v656
          %vm661 = vcmp.ne.f32.partialorder %v657, %v657
          %v662 = vadd.f32 %v656, 0.0
          %v663 = vadd.f32 %v657, 0.0
          %v664 = vand.u32 2147483647, %v656
          %v665 = vand.u32 2147483647, %v657
          %v666 = vsub.f32 0.0, %v664
          %v667 = vsub.f32 0.0, %v665
          %v668 = vmul.f32 %v666, 1.442695
          %v669 = vpow.pop %v668
          %v670 = vmul.f32 %v667, 1.442695
          %v671 = vpow.pop %v670
          %v672 = vadd.f32 %v669, 1.0
          %v673 = vlog2.pop %v672
          %v674 = vmul.f32 %v673, 0.6931472
          %v675 = vmul.f32 -0.5, %v669
          %v676 = vadd.f32 %v675, 1.0
          %v677 = vmul.f32 %v676, %v669
          %v678 = vand.u32 2147483647, %v669
          %vm679 = vcmp.lt.f32.partialorder %v678, 0.0004427343
          %v680 = vsel %vm679, %v677, %v674
          %v681 = vadd.f32 %v671, 1.0
          %v682 = vlog2.pop %v681
          %v683 = vmul.f32 %v682, 0.6931472
          %v684 = vmul.f32 -0.5, %v671
          %v685 = vadd.f32 %v684, 1.0
          %v686 = vmul.f32 %v685, %v671
          %v687 = vand.u32 2147483647, %v671
          %vm688 = vcmp.lt.f32.partialorder %v687, 0.0004427343
          %v689 = vsel %vm688, %v686, %v683
          %v690 = vadd.f32 %v658, %v680
          %v691 = vadd.f32 %v659, %v689
          %v692 = vsel %vm660, %v662, %v690
          %v693 = vsel %vm661, %v663, %v691
          %v694 = vld [vmem:[#allocation3] sm:$0x3]
          %v695 = vadd.f32 %v694, 1e-06
          %697 = vset.pattern.permute.xlu0 0
          %698 = vperm.xlu0 %697, %v695
          %v699 = vpop.permute.xlu0 %698
          %v701 = vmul.f32 %v692, %v699
          %v702 = vmul.f32 %v693, %v699
          %vm703 = vcmask 1041408
          %v704 = vsel %vm703, %v701, 0.0
          %v705 = vrot.slane %v704, 4
          %v706 = vadd.f32 %v704, %v705
          %v707 = vrot.slane %v706, 2
          %v708 = vadd.f32 %v706, %v707
          %v709 = vrot.slane %v708, 1
          %v710 = vadd.f32 %v708, %v709
          %v711 = vsel %vm703, %v702, 0.0
          %v712 = vrot.slane %v711, 4
          %v713 = vadd.f32 %v711, %v712
          %v714 = vrot.slane %v713, 2
          %v715 = vadd.f32 %v713, %v714
          %v716 = vrot.slane %v715, 1
          %v717 = vadd.f32 %v715, %v716
          %v718 = vrcp.pop %v710
          %v719 = vrcp.pop %v717
          %v720 = vld [vmem:[#allocation2] sm:$0xff]
          %v721 = vld [vmem:[#allocation2 + $0x8] sm:$0xff]
          %723 = vset.pattern.permute.xlu0 0
          %724 = vperm.xlu0 %723, %v720
          %v725 = vpop.permute.xlu0 %724
          %728 = vset.pattern.permute.xlu0 0
          %729 = vperm.xlu0 %728, %v721
          %v730 = vpop.permute.xlu0 %729
          %v732 = vperm.slane %v692, 0
          %v733 = vperm.slane %v693, 0
          %v734 = vmul.f32 %v725, %v732
          %v735 = vmul.f32 %v725, %v733
          %v736 = vmul.f32 %v730, %v732
          %v737 = vmul.f32 %v730, %v733
          %738 = vset.pattern.permute.xlu0 1
          %739 = vperm.xlu0 %738, %v720
          %v740 = vpop.permute.xlu0 %739
          %742 = vset.pattern.permute.xlu0 1
          %743 = vperm.xlu0 %742, %v721
          %v744 = vpop.permute.xlu0 %743
          %v746 = vperm.slane %v692, 1
          %v747 = vperm.slane %v693, 1
          %v748 = vmul.f32 %v740, %v746
          %v749 = vmul.f32 %v740, %v747
          %v750 = vmul.f32 %v744, %v746
          %v751 = vmul.f32 %v744, %v747
          %v752 = vadd.f32 %v734, %v748
          %v753 = vadd.f32 %v735, %v749
          %v754 = vadd.f32 %v736, %v750
          %v755 = vadd.f32 %v737, %v751
          %v756 = vmul.f32 %v588, 2.0
          %v757 = vmul.f32 %v589, 2.0
          %v758 = vmul.f32 %v590, 2.0
          %v759 = vmul.f32 %v591, 2.0
          %v760 = vmul.f32 %v752, %v718
          %v761 = vmul.f32 %v753, %v719
          %v762 = vmul.f32 %v754, %v718
          %v763 = vmul.f32 %v755, %v719
          %v764 = vstv %s594
          %v765 = vmul.f32 %v764, %v760
          %v766 = vmul.f32 %v764, %v761
          %v767 = vmul.f32 %v764, %v762
          %v768 = vmul.f32 %v764, %v763
          %v769 = vadd.f32 %v756, %v765
          %v770 = vadd.f32 %v757, %v766
          %v771 = vadd.f32 %v758, %v767
          %v772 = vadd.f32 %v759, %v768
          %v773 = vstv %s595
          %v774 = vmul.f32 %v773, %v624
          %v775 = vmul.f32 %v773, %v642
          %v776 = vmul.f32 %v773, %v626
          %v777 = vmul.f32 %v773, %v644
          %v778 = vadd.f32 %v769, %v774
          %v779 = vadd.f32 %v770, %v775
          %v780 = vadd.f32 %v771, %v776
          %v781 = vadd.f32 %v772, %v777
          %782 = vst [vmem:[%s312] sm:$0xff] %v778
          %783 = vst [vmem:[%s312 + $0x8] sm:$0xff] %v779
          %784 = vst [vmem:[%s312 + $0x10] sm:$0xff] %v780
          %785 = vst [vmem:[%s312 + $0x18] sm:$0xff] %v781
        $region68: #{tpu_custom_call.1} parent=43 // pred_fallthru
          _
        %s786 = sand.u32 %s188, 1
        %s787 = scalar_lea.sflag [#allocation8], %s786
        %s788 = sand.u32 %s188, 1
        %s789 = smul.addr %s788, 32
        %s790 = scalar_lea.vmem [#allocation11], %s789
        // Predicated region
        $region69: #{tpu_custom_call.1} parent=43 // pred_check
          %p791 = pneg %p198
        $region70: #{tpu_custom_call.1} parent=43 // pred_check_branch
          %793 = sbr.rel (%p791) target = $region72
        $region71: #{tpu_custom_call.1} parent=43 // pred_region
          %s794 = smul.u32 %s31, %s30
          %s795 = smul.u32 2, %s794
          %797 = vsyncadd %s787, 0
          %s798 = smul.addr %s29, 4
          %s799 = sadd.s32 %s795, %s798
          %s800 = smul.addr %s799, 8
          %s801 = scalar_lea.hbm %s6, %s800
          %s802 = sshll.u32 %s790, 4
          %s803 = int_to_ptr.vmem [resolvable:$true] %s802
          %s804 = sshll.u32 %s801, 4
          %s805 = int_to_ptr.hbm [resolvable:$true] %s804
          %810 = dma.vmem_to_hbm [thread:$0]  %s803, 512, %s805, %s787, 256, 256, 16
        $region72: #{tpu_custom_call.1} parent=43 // pred_fallthru
          _
      $region44: #{tpu_custom_call.1} parent=5 // pred_fallthru
        _
      %p811 = scmp.le.s32.totalorder 2, %s19
      // Predicated region
      $region73: #{tpu_custom_call.1} parent=5 // pred_check
        %p812 = pneg %p811
      $region74: #{tpu_custom_call.1} parent=5 // pred_check_branch
        %814 = sbr.rel (%p812) target = $region76
      $region75: #{tpu_custom_call.1} parent=5 // pred_region
        %s815 = ssub.s32 %s19, 2
        // Predicated region
        $region77: #{tpu_custom_call.1} parent=75 // pred_check
          %p816 = pneg %p204
        $region78: #{tpu_custom_call.1} parent=75 // pred_check_branch
          %818 = sbr.rel (%p816) target = $region80
        $region79: #{tpu_custom_call.1} parent=75 // pred_region
          %s819 = sand.u32 %s189, 1
          %s820 = scalar_lea.sflag [#allocation8], %s819
          %s821 = sand.u32 %s189, 1
          %s822 = smul.addr %s821, 32
          %s823 = scalar_lea.vmem [#allocation11], %s822
          %825 = dma.done %s820, 512
        $region80: #{tpu_custom_call.1} parent=75 // pred_fallthru
          _
      $region76: #{tpu_custom_call.1} parent=5 // pred_fallthru
        _
    $region6: #{tpu_custom_call.1} parent=1 // loop_footer
      %s23 = sadd.s32 1, %s19
    $region7: #{tpu_custom_call.1} parent=1 // loop_footer_branch
      %18 = sbr.rel target = $region3
    $region8: #{tpu_custom_call.1} parent=1 // loop_exit
      _
    %826 = vsyncpa [#allocation7], 1
    %s827 = scalar_lea.sflag [#allocation7], 1
    %828 = vsyncpa %s827, 1
    %829 = vsyncpa [#allocation8], 1
    %s830 = scalar_lea.sflag [#allocation8], 1
    %831 = vsyncpa %s830, 1
    %832 = vsyncpa [#allocation9], 1
    %s833 = scalar_lea.sflag [#allocation9], 1
    %834 = vsyncpa %s833, 1

</llo_original>
